<compile_context>
chip_gen: v7x
topology: tpu7x:2x2x1
jax: 0.10.0
libtpu: 0.0.40
codegen_flags: <defaults>
</compile_context>

<pallas_src>
import jax
import jax.numpy as jnp
import numpy as np
from jax.experimental import pallas as pl
from jax.experimental.pallas import tpu as pltpu


def attention_kernel(f_ref, dec_ref, we_ref, wa_ref, alphas_ref, ctx_ref):
    BT, P, E = f_ref.shape
    A = we_ref.shape[1]

    f = f_ref[...]                                                # (BT, P, E)

    # Encoder projection as a single MXU matmul with M = BT*P.
    enc = jnp.dot(f.reshape(BT * P, E), we_ref[...],
                  preferred_element_type=jnp.float32)             # (BT*P, A)
    enc = enc.reshape(BT, P, A)

    # dec already includes b_d + b_e (hoisted to the wrapper); broadcast over P.
    comb = jnp.maximum(enc + dec_ref[...][:, None, :], 0.0)       # (BT, P, A)

    # LinearAttention with out_features=1: instead of an N=1 MXU matmul, do a
    # VPU broadcast-multiply + lane reduction. b_a is dropped (cancels in the
    # softmax below).
    scores = jnp.sum(comb * wa_ref[...][None, :, :], axis=-1)     # (BT, P)

    # Softmax over the pixel axis (now the lane axis -> lane-dense output).
    m = jnp.max(scores, axis=-1, keepdims=True)                   # (BT, 1)
    e = jnp.exp(scores - m)                                       # (BT, P)
    denom = jnp.sum(e, axis=-1, keepdims=True)                    # (BT, 1)
    alphas = e / denom                                            # (BT, P)

    alphas_ref[...] = alphas

    # context[b, :] = sum_p alphas[b, p] * features[b, p, :]
    # VPU multiply + sublane reduce; at toy P/E an MXU formulation would run at
    # M=1 per batch row and waste the systolic array.
    ctx_ref[...] = jnp.sum(f * alphas[:, :, None], axis=1)        # (BT, E)


def attention_forward(features, hidden, params, *, batch_tile=None):
    features = features.astype(jnp.float32)
    hidden = hidden.astype(jnp.float32)
    B, P, E = features.shape
    A = params["W_e"].shape[1]

    # Hoist the decoder projection out of the kernel: one batched XLA matmul
    # (M=B), with the encoder bias folded in so the kernel adds a single bias.
    dec = hidden @ params["W_d"] + params["b_d"] + params["b_e"]  # (B, A)
    wa_row = params["W_a"].reshape(1, A).astype(jnp.float32)      # (1, A)

    # Batch tile: whole batch for tiny B, otherwise a multiple-of-8 tile so the
    # (sublane, lane) block constraints hold after padding.
    if batch_tile is None:
        batch_tile = B if B <= 8 else 8
    BT = batch_tile
    n_tiles = pl.cdiv(B, BT)
    Bp = n_tiles * BT
    if Bp != B:
        features = jnp.pad(features, ((0, Bp - B), (0, 0), (0, 0)))
        dec = jnp.pad(dec, ((0, Bp - B), (0, 0)))

    cost = pl.CostEstimate(
        flops=int(2 * Bp * P * E * A + 2 * Bp * P * A + 2 * Bp * P * E),
        transcendentals=int(Bp * P),
        bytes_accessed=int(4 * (Bp * P * E + E * A + Bp * A + Bp * P + Bp * E)),
    )

    alphas, ctx = pl.pallas_call(
        attention_kernel,
        out_shape=(
            jax.ShapeDtypeStruct((Bp, P), jnp.float32),
            jax.ShapeDtypeStruct((Bp, E), jnp.float32),
        ),
        grid_spec=pltpu.PrefetchScalarGridSpec(
            num_scalar_prefetch=0,
            grid=(n_tiles,),
            in_specs=[
                pl.BlockSpec((BT, P, E), lambda b: (b, 0, 0)),    # features tile
                pl.BlockSpec((BT, A),    lambda b: (b, 0)),       # dec (+ b_d + b_e)
                pl.BlockSpec((E, A),     lambda b: (0, 0)),       # W_e
                pl.BlockSpec((1, A),     lambda b: (0, 0)),       # W_a as a row
            ],
            out_specs=[
                pl.BlockSpec((BT, P), lambda b: (b, 0)),          # alphas (lane-dense)
                pl.BlockSpec((BT, E), lambda b: (b, 0)),          # context vectors
            ],
        ),
        compiler_params=pltpu.CompilerParams(
            dimension_semantics=("parallel",),                    # megacore on v7x
        ),
        cost_estimate=cost,
    )(features, dec, params["W_e"].astype(jnp.float32), wa_row)

    return alphas[:B], ctx[:B]                                    # (B, P), (B, E)


def reference_forward(features, hidden, p):
    enc = features @ p["W_e"] + p["b_e"]
    dec = hidden @ p["W_d"] + p["b_d"]
    comb = jax.nn.relu(enc + dec[:, None, :])
    scores = (comb @ p["W_a"] + p["b_a"])[..., 0]
    alphas = jax.nn.softmax(scores, axis=1)
    ctx = (features * alphas[..., None]).sum(axis=1)
    return alphas, ctx


if __name__ == "__main__":
    # small shapes consistent with the module
    B, P = 2, 16            # batch, number of annotation vectors (pixels)
    encoder_dim, decoder_dim, attention_dim = 32, 48, 64

    key = jax.random.PRNGKey(0)
    k = jax.random.split(key, 8)

    features = jax.random.normal(k[0], (B, P, encoder_dim), dtype=jnp.float32)
    hidden = jax.random.normal(k[1], (B, decoder_dim), dtype=jnp.float32)

    # deterministic synthetic parameters (shapes from the nn.Linear defs)
    params = {
        "W_e": 0.1 * jax.random.normal(k[2], (encoder_dim, attention_dim), jnp.float32),
        "b_e": 0.1 * jax.random.normal(k[3], (1, attention_dim), jnp.float32),
        "W_d": 0.1 * jax.random.normal(k[4], (decoder_dim, attention_dim), jnp.float32),
        "b_d": 0.1 * jax.random.normal(k[5], (1, attention_dim), jnp.float32),
        "W_a": 0.1 * jax.random.normal(k[6], (attention_dim, 1), jnp.float32),
        "b_a": 0.1 * jax.random.normal(k[7], (1, 1), jnp.float32),
    }

    alphas, ctx = attention_forward(features, hidden, params)
    jax.block_until_ready((alphas, ctx))

    alphas_ref_v, ctx_ref_v = reference_forward(features, hidden, params)
    np.testing.assert_allclose(np.asarray(alphas), np.asarray(alphas_ref_v), rtol=1e-5, atol=1e-5)
    np.testing.assert_allclose(np.asarray(ctx), np.asarray(ctx_ref_v), rtol=1e-5, atol=1e-5)

    print("KERNEL_OK")
</pallas_src>

<mosaic_0001>
module attributes {stable_mosaic.version = 11 : i64} {
  func.func @attention_kernel(%arg0: i32, %arg1: memref<2x16x32xf32, #tpu.memory_space<vmem>>, %arg2: memref<2x64xf32, #tpu.memory_space<vmem>>, %arg3: memref<32x64xf32, #tpu.memory_space<vmem>>, %arg4: memref<1x64xf32, #tpu.memory_space<vmem>>, %arg5: memref<2x16xf32, #tpu.memory_space<vmem>>, %arg6: memref<2x32xf32, #tpu.memory_space<vmem>>) attributes {dimension_semantics = [#tpu.dimension_semantics<parallel>], iteration_bounds = array<i64: 1>, scalar_prefetch = 0 : i64, scratch_operands = 0 : i64, tpu.core_type = #tpu.core_type<tc>, window_params = [{transform_indices = @transform_0, window_bounds = array<i64: 2, 16, 32>}, {transform_indices = @transform_1, window_bounds = array<i64: 2, 64>}, {pipeline_mode = #tpu.pipeline_mode<synchronous>, transform_indices = @transform_2, window_bounds = array<i64: 32, 64>}, {pipeline_mode = #tpu.pipeline_mode<synchronous>, transform_indices = @transform_3, window_bounds = array<i64: 1, 64>}, {transform_indices = @transform_4, window_bounds = array<i64: 2, 16>}, {transform_indices = @transform_5, window_bounds = array<i64: 2, 32>}]} {
    %c0 = arith.constant 0 : index
    %c0_0 = arith.constant 0 : index
    %c0_1 = arith.constant 0 : index
    %0 = vector.load %arg1[%c0, %c0_0, %c0_1] : memref<2x16x32xf32, #tpu.memory_space<vmem>>, vector<2x16x32xf32>
    %1 = vector.shape_cast %0 : vector<2x16x32xf32> to vector<32x32xf32>
    %c0_2 = arith.constant 0 : index
    %c0_3 = arith.constant 0 : index
    %2 = vector.load %arg3[%c0_2, %c0_3] : memref<32x64xf32, #tpu.memory_space<vmem>>, vector<32x64xf32>
    %cst = arith.constant dense<0.000000e+00> : vector<32x64xf32>
    %3 = tpu.matmul %1, %2, %cst {dimension_numbers = #tpu.dot_dimension_numbers<[1], [0], [0], [1], [0, 0, 1, 1], [], []>} : vector<32x32xf32>, vector<32x64xf32>, vector<32x64xf32> -> vector<32x64xf32>
    %4 = vector.shape_cast %3 : vector<32x64xf32> to vector<2x16x64xf32>
    %c0_4 = arith.constant 0 : index
    %c0_5 = arith.constant 0 : index
    %5 = vector.load %arg2[%c0_4, %c0_5] : memref<2x64xf32, #tpu.memory_space<vmem>>, vector<2x64xf32>
    %6 = vector.shape_cast %5 : vector<2x64xf32> to vector<2x1x64xf32>
    %7 = vector.broadcast %6 : vector<2x1x64xf32> to vector<2x16x64xf32>
    %8 = arith.addf %4, %7 : vector<2x16x64xf32>
    %cst_6 = arith.constant 0.000000e+00 : f32
    %9 = vector.broadcast %cst_6 : f32 to vector<2x16x64xf32>
    %10 = arith.maximumf %8, %9 : vector<2x16x64xf32>
    %c0_7 = arith.constant 0 : index
    %c0_8 = arith.constant 0 : index
    %11 = vector.load %arg4[%c0_7, %c0_8] : memref<1x64xf32, #tpu.memory_space<vmem>>, vector<1x64xf32>
    %12 = vector.shape_cast %11 : vector<1x64xf32> to vector<1x1x64xf32>
    %13 = vector.broadcast %12 : vector<1x1x64xf32> to vector<2x16x64xf32>
    %14 = arith.mulf %10, %13 : vector<2x16x64xf32>
    %cst_9 = arith.constant dense<0.000000e+00> : vector<2x16xf32>
    %15 = vector.multi_reduction <add>, %14, %cst_9 [2] : vector<2x16x64xf32> to vector<2x16xf32>
    %cst_10 = arith.constant dense<0xFF800000> : vector<2xf32>
    %16 = vector.multi_reduction <maximumf>, %15, %cst_10 [1] : vector<2x16xf32> to vector<2xf32>
    %17 = vector.shape_cast %16 : vector<2xf32> to vector<2x1xf32>
    %18 = vector.broadcast %17 : vector<2x1xf32> to vector<2x16xf32>
    %19 = arith.subf %15, %18 : vector<2x16xf32>
    %20 = math.exp %19 : vector<2x16xf32>
    %cst_11 = arith.constant dense<0.000000e+00> : vector<2xf32>
    %21 = vector.multi_reduction <add>, %20, %cst_11 [1] : vector<2x16xf32> to vector<2xf32>
    %22 = vector.shape_cast %21 : vector<2xf32> to vector<2x1xf32>
    %23 = vector.broadcast %22 : vector<2x1xf32> to vector<2x16xf32>
    %24 = arith.divf %20, %23 : vector<2x16xf32>
    %c0_12 = arith.constant 0 : index
    %c0_13 = arith.constant 0 : index
    %25 = vector.load %arg5[%c0_12, %c0_13] : memref<2x16xf32, #tpu.memory_space<vmem>>, vector<2x16xf32>
    tpu.vector_store %arg5[%c0_12, %c0_13], %24 {strides = array<i32>} : memref<2x16xf32, #tpu.memory_space<vmem>>, vector<2x16xf32>,
    %26 = vector.shape_cast %24 : vector<2x16xf32> to vector<2x16x1xf32>
    %27 = vector.broadcast %26 : vector<2x16x1xf32> to vector<2x16x32xf32>
    %28 = arith.mulf %0, %27 : vector<2x16x32xf32>
    %cst_14 = arith.constant dense<0.000000e+00> : vector<2x32xf32>
    %29 = vector.multi_reduction <add>, %28, %cst_14 [1] : vector<2x16x32xf32> to vector<2x32xf32>
    %c0_15 = arith.constant 0 : index
    %c0_16 = arith.constant 0 : index
    %30 = vector.load %arg6[%c0_15, %c0_16] : memref<2x32xf32, #tpu.memory_space<vmem>>, vector<2x32xf32>
    tpu.vector_store %arg6[%c0_15, %c0_16], %29 {strides = array<i32>} : memref<2x32xf32, #tpu.memory_space<vmem>>, vector<2x32xf32>,
    return
  }
  func.func @transform_0(%arg0: i32) -> (i32, i32, i32) {
    %c0_i32 = arith.constant 0 : i32
    %c0_i32_0 = arith.constant 0 : i32
    %c0_i32_1 = arith.constant 0 : i32
    return %arg0, %c0_i32, %c0_i32_0 : i32, i32, i32
  }
  func.func @transform_1(%arg0: i32) -> (i32, i32) {
    %c0_i32 = arith.constant 0 : i32
    %c0_i32_0 = arith.constant 0 : i32
    return %arg0, %c0_i32 : i32, i32
  }
  func.func @transform_2(%arg0: i32) -> (i32, i32) {
    %c0_i32 = arith.constant 0 : i32
    %c0_i32_0 = arith.constant 0 : i32
    %c0_i32_1 = arith.constant 0 : i32
    return %c0_i32, %c0_i32_0 : i32, i32
  }
  func.func @transform_3(%arg0: i32) -> (i32, i32) {
    %c0_i32 = arith.constant 0 : i32
    %c0_i32_0 = arith.constant 0 : i32
    %c0_i32_1 = arith.constant 0 : i32
    return %c0_i32, %c0_i32_0 : i32, i32
  }
  func.func @transform_4(%arg0: i32) -> (i32, i32) {
    %c0_i32 = arith.constant 0 : i32
    %c0_i32_0 = arith.constant 0 : i32
    return %arg0, %c0_i32 : i32, i32
  }
  func.func @transform_5(%arg0: i32) -> (i32, i32) {
    %c0_i32 = arith.constant 0 : i32
    %c0_i32_0 = arith.constant 0 : i32
    return %arg0, %c0_i32 : i32, i32
  }
}

</mosaic_0001>

<llo_original>
// kernel: tpu_custom_call.1
$region0: #{tpu_custom_call.1}
  #allocation0 [shape = 'u32[]', space=smem, size = 0x4, offset = 0x4, fixed_abs, tag = 'smem constant byte address 0x4 - core index']
  #allocation1 [shape = 'u32[144,128]{1,0:T(1,128)}', space=vmem, size = 0x12000, scoped, tag = 'internal scratch']
  %s0 = inlined_call_operand.hbm [shape: f32[2,16,32], index: 0, kind: input, shape index: {}]
  %s1 = inlined_call_operand.vmem [shape: f32[2,64], index: 1, kind: input, shape index: {}]
  %s2 = inlined_call_operand.hbm [shape: f32[32,64], index: 2, kind: input, shape index: {}]
  %s3 = inlined_call_operand.vmem [shape: f32[1,64], index: 3, kind: input, shape index: {}]
  %s4 = inlined_call_operand.hbm [shape: f32[2,16], index: 4, kind: output, shape index: {0}]
  %s5 = inlined_call_operand.hbm [shape: f32[2,32], index: 5, kind: output, shape index: {1}]
  %6 = xla_tuple %s4, %s5
  %s7 = sld [smem:[#allocation0]]
  $region42: #{tpu_custom_call.1} parent=0
    _
  %s9 = ssub.s32 1, %s7
  %s10 = scalar_select 0, %s9, %s7
  $region1: #{tpu_custom_call.1} parent=0
    #allocation2 [shape = 'u8[16384]{0}', space=vmem, size = 0x4000, scoped, tag = 'input window, operand 0, single buffered']
    #allocation3 [shape = 's32[1]{0}', space=sflag, size = 0x4, scoped, tag = 'scoped memory for tpu_custom_call.1']
    #allocation4 [shape = 's32[1]{0}', space=sflag, size = 0x4, scoped, tag = 'scoped memory for tpu_custom_call.1']
    #allocation5 [shape = 'u8[16384]{0}', space=vmem, size = 0x4000, scoped, tag = 'input window, operand 2, single buffered']
    #allocation6 [shape = 's32[1]{0}', space=sflag, size = 0x4, scoped, tag = 'scoped memory for tpu_custom_call.1']
    #allocation7 [shape = 'u8[1024]{0}', space=vmem, size = 0x400, scoped, tag = 'output window, operand 0, single buffered']
    #allocation8 [shape = 'u8[1024]{0}', space=vmem, size = 0x400, scoped, tag = 'output window, operand 1, single buffered']
    #allocation9 [shape = 's32[1]{0}', space=sflag, size = 0x4, scoped, tag = 'scoped memory for tpu_custom_call.1']
    %11 = vsyncpa [#allocation3], 0
    %12 = vsyncpa [#allocation6], 0
    %13 = vsyncpa [#allocation4], 0
    %14 = vsyncpa [#allocation9], 0
    // Predicated region
    $region2: #{tpu_custom_call.1} parent=1 // pred_check
      _
    $region3: #{tpu_custom_call.1} parent=1 // pred_check_branch
      %16 = sbr.rel (0) target = $region5
    $region4: #{tpu_custom_call.1} parent=1 // pred_region
      %s18 = ssub.s32 512, 512
      %19 = vsyncadd [#allocation3], %s18
      %s20 = sshll.u32 [#allocation2], 4
      %s21 = int_to_ptr.vmem [resolvable:$true] %s20
      %26 = dma.hbm_to_vmem [thread:$0]  %s0, 512, %s21, [#allocation3], 128, 128, 8
    $region5: #{tpu_custom_call.1} parent=1 // pred_fallthru
      _
    // Predicated region
    $region6: #{tpu_custom_call.1} parent=1 // pred_check
      _
    $region7: #{tpu_custom_call.1} parent=1 // pred_check_branch
      %28 = sbr.rel (0) target = $region9
    $region8: #{tpu_custom_call.1} parent=1 // pred_region
      _
    $region9: #{tpu_custom_call.1} parent=1 // pred_fallthru
      _
    // Predicated region
    $region10: #{tpu_custom_call.1} parent=1 // pred_check
      _
    $region11: #{tpu_custom_call.1} parent=1 // pred_check_branch
      %30 = sbr.rel (0) target = $region13
    $region12: #{tpu_custom_call.1} parent=1 // pred_region
      %s32 = ssub.s32 512, 512
      %33 = vsyncadd [#allocation6], %s32
      %s34 = sshll.u32 [#allocation5], 4
      %s35 = int_to_ptr.vmem [resolvable:$true] %s34
      %40 = dma.hbm_to_vmem [thread:$0]  %s2, 512, %s35, [#allocation6], 128, 128, 8
    $region13: #{tpu_custom_call.1} parent=1 // pred_fallthru
      _
    // Predicated region
    $region14: #{tpu_custom_call.1} parent=1 // pred_check
      _
    $region15: #{tpu_custom_call.1} parent=1 // pred_check_branch
      %42 = sbr.rel (0) target = $region17
    $region16: #{tpu_custom_call.1} parent=1 // pred_region
      _
    $region17: #{tpu_custom_call.1} parent=1 // pred_fallthru
      _
    // Predicated region
    $region18: #{tpu_custom_call.1} parent=1 // pred_check
      _
    $region19: #{tpu_custom_call.1} parent=1 // pred_check_branch
      %44 = sbr.rel (0) target = $region21
    $region20: #{tpu_custom_call.1} parent=1 // pred_region
      %45 = dma.done [#allocation3], 512
    $region21: #{tpu_custom_call.1} parent=1 // pred_fallthru
      _
    // Predicated region
    $region22: #{tpu_custom_call.1} parent=1 // pred_check
      _
    $region23: #{tpu_custom_call.1} parent=1 // pred_check_branch
      %47 = sbr.rel (0) target = $region25
    $region24: #{tpu_custom_call.1} parent=1 // pred_region
      %48 = dma.done [#allocation6], 512
    $region25: #{tpu_custom_call.1} parent=1 // pred_fallthru
      _
    %v49 = vld [vmem:[#allocation2] sm:$0xff]
    %v50 = vld [vmem:[#allocation2 + $0x8] sm:$0xff]
    %v51 = vld [vmem:[#allocation2 + $0x10] sm:$0xff]
    %v52 = vld [vmem:[#allocation2 + $0x18] sm:$0xff]
    %v53 = vld [vmem:[#allocation5] sm:$0xff]
    %v54 = vld [vmem:[#allocation5 + $0x8] sm:$0xff]
    %v55 = vld [vmem:[#allocation5 + $0x10] sm:$0xff]
    %v56 = vld [vmem:[#allocation5 + $0x18] sm:$0xff]
    %vm57 = vcmask 261120
    %v59 = vsel %vm57, %v49, 0
    %v62 = vsel %vm57, %v50, 0
    %v65 = vsel %vm57, %v51, 0
    %v68 = vsel %vm57, %v52, 0
    %70 = vmatprep.subr.mxu0 0.0
    %71 = vmatpush1.msra.mxu0 %v53
    %72 = vmatprep.subr.mxu0 0.0
    %73 = vmatpush1.msra.mxu0 %v54
    %74 = vmatprep.subr.mxu0 0.0
    %75 = vmatpush1.msra.mxu0 %v55
    %76 = vmatprep.subr.mxu0 0.0
    %77 = vmatpush1.msra.mxu0 %v56
    %78 = vmatprep.subr.mxu0 0.0
    %79 = vmatpush1.msra.mxu0 0.0
    %80 = vmatprep.subr.mxu0 0.0
    %81 = vmatpush1.msra.mxu0 0.0
    %82 = vmatprep.subr.mxu0 0.0
    %83 = vmatpush1.msra.mxu0 0.0
    %84 = vmatprep.subr.mxu0 0.0
    %85 = vmatpush1.msra.mxu0 0.0
    %86 = vmatprep.subr.mxu0 0.0
    %87 = vmatpush1.msra.mxu0 0.0
    %88 = vmatprep.subr.mxu0 0.0
    %89 = vmatpush1.msra.mxu0 0.0
    %90 = vmatprep.subr.mxu0 0.0
    %91 = vmatpush1.msra.mxu0 0.0
    %92 = vmatprep.subr.mxu0 0.0
    %93 = vmatpush1.msra.mxu0 0.0
    %94 = vmatprep.subr.mxu0 0.0
    %95 = vmatpush1.msra.mxu0 0.0
    %96 = vmatprep.subr.mxu0 0.0
    %97 = vmatpush1.msra.mxu0 0.0
    %98 = vmatprep.subr.mxu0 0.0
    %99 = vmatpush1.msra.mxu0 0.0
    %100 = vmatprep.subr.mxu0 0.0
    %101 = vmatpush1.msra.mxu0 0.0
    %102 = vmatprep.subr.mxu0 0.0
    %103 = vmatpush1.msra.mxu0 0.0
    %104 = vmatprep.subr.mxu0 0.0
    %105 = vmatpush1.msra.mxu0 0.0
    %106 = vmatprep.subr.mxu0 0.0
    %107 = vmatpush1.msra.mxu0 0.0
    %108 = vmatprep.subr.mxu0 0.0
    %109 = vmatpush1.msra.mxu0 0.0
    %110 = vmatprep.subr.mxu0 0.0
    %111 = vmatpush1.msra.mxu0 0.0
    %112 = vmatprep.subr.mxu0 0.0
    %113 = vmatpush1.msra.mxu0 0.0
    %114 = vmatprep.subr.mxu0 0.0
    %115 = vmatpush1.msra.mxu0 0.0
    %116 = vmatprep.subr.mxu0 0.0
    %117 = vmatpush1.msra.mxu0 0.0
    %118 = vmatprep.subr.mxu0 0.0
    %119 = vmatpush1.msra.mxu0 0.0
    %120 = vmatprep.subr.mxu0 0.0
    %121 = vmatpush1.msra.mxu0 0.0
    %122 = vmatprep.subr.mxu0 0.0
    %123 = vmatpush1.msra.mxu0 0.0
    %124 = vmatprep.subr.mxu0 0.0
    %125 = vmatpush1.msra.mxu0 0.0
    %126 = vmatprep.subr.mxu0 0.0
    %127 = vmatpush1.msra.mxu0 0.0
    %128 = vmatprep.subr.mxu0 0.0
    %129 = vmatpush1.msra.mxu0 0.0
    %130 = vmatprep.subr.mxu0 0.0
    %131 = vmatpush1.msra.mxu0 0.0
    %132 = vmatprep.subr.mxu0 0.0
    %133 = vmatpush1.msra.mxu0 0.0
    %134 = vmatprep.mubr.f32.mxu0 0.0
    %135 = vmatmul.mubr.f32.gmra.mrb[0].mxu0 %v59
    %v136 = vpop.f32.mrb[0].mxu0
    %v137 = vadd.f32 0.0, %v136
    %v138 = vpop.f32.mrb[0].mxu0
    %139 = vmatprep.mubr.f32.mxu0 0.0
    %140 = vmatmul.mubr.f32.gmra.mrb[0].mxu0 %v62
    %v141 = vpop.f32.mrb[0].mxu0
    %v142 = vadd.f32 0.0, %v141
    %v143 = vpop.f32.mrb[0].mxu0
    %144 = vmatprep.mubr.f32.mxu0 0.0
    %145 = vmatmul.mubr.f32.gmra.mrb[0].mxu0 %v65
    %v146 = vpop.f32.mrb[0].mxu0
    %v147 = vadd.f32 0.0, %v146
    %v148 = vpop.f32.mrb[0].mxu0
    %149 = vmatprep.mubr.f32.mxu0 0.0
    %150 = vmatmul.mubr.f32.gmra.mrb[0].mxu0 %v68
    %v151 = vpop.f32.mrb[0].mxu0
    %v152 = vadd.f32 0.0, %v151
    %v153 = vpop.f32.mrb[0].mxu0
    %154 = vdwg.mxu0
    %v155 = vld [vmem:[%s1] sm:$0x3]
    %v158 = vunpack.c.l.s4 1966171168
    %v159 = vunpack.c.0.s8 %v158
    %v160 = vlaneseq
    %v161 = vshrl.u32 %v160, 7
    %v162 = vsub.s32 %v159, %v161
    %v163 = vrot.slane %v155, %v162
    %v164 = vcombine.high %v163, %v163
    %v166 = vunpack.c.l.s4 1966171168
    %v167 = vunpack.c.0.s8 %v166
    %v168 = vlaneseq
    %v169 = vshrl.u32 %v168, 7
    %v170 = vsub.s32 %v167, %v169
    %v171 = vrot.slane %v163, %v170
    %v173 = vunpack.c.l.s4 1966171168
    %v174 = vunpack.c.0.s8 %v173
    %v175 = vlaneseq
    %v176 = vshrl.u32 %v175, 7
    %v177 = vsub.s32 %v174, %v176
    %v178 = vrot.slane %v164, %v177
    %v179 = vlaneseq
    %v180 = vshrl.u32 %v179, 7
    %v181 = vsub.s32 0, %v180
    %v182 = vrot.slane %v171, %v181
    %v183 = vlaneseq
    %v184 = vshrl.u32 %v183, 7
    %v185 = vsub.s32 0, %v184
    %v186 = vrot.slane %v178, %v185
    %v189 = vadd.f32 %v137, %v182
    %v190 = vadd.f32 %v142, %v182
    %v191 = vadd.f32 %v147, %v186
    %v192 = vadd.f32 %v152, %v186
    %v193 = vmax.f32 %v189, 0.0
    %v194 = vmax.f32 %v190, 0.0
    %v195 = vmax.f32 %v191, 0.0
    %v196 = vmax.f32 %v192, 0.0
    %v197 = vld [vmem:[%s3] sm:$0x1]
    %v199 = vlaneseq
    %v200 = vshrl.u32 %v199, 7
    %v201 = vsub.s32 0, %v200
    %v202 = vrot.slane %v197, %v201
    %v204 = vmul.f32 %v193, %v202
    %v205 = vmul.f32 %v194, %v202
    %v206 = vmul.f32 %v195, %v202
    %v207 = vmul.f32 %v196, %v202
    %vm208 = vcmask 523264
    %v209 = vsel %vm208, %v204, 0.0
    %210 = vadd.xlane.f32.xlu0 %v209
    %v211 = vpop.xlane.xlu0 %210
    %v212 = vsel %vm208, %v205, 0.0
    %213 = vadd.xlane.f32.xlu0 %v212
    %v214 = vpop.xlane.xlu0 %213
    %v215 = vsel %vm208, %v206, 0.0
    %216 = vadd.xlane.f32.xlu0 %v215
    %v217 = vpop.xlane.xlu0 %216
    %v218 = vsel %vm208, %v207, 0.0
    %219 = vadd.xlane.f32.xlu0 %v218
    %v220 = vpop.xlane.xlu0 %219
    %v225 = vlaneseq
    %v226 = vand.u32 %v225, 127
    %v227 = vlaneseq
    %v228 = vshrl.u32 %v227, 7
    %v229 = vsub.s32 %v226, %v228
    %v230 = vrot.slane %v211, %v229
    %v231 = vadd.s32 %v226, 4294967288
    %v232 = vlaneseq
    %v233 = vshrl.u32 %v232, 7
    %v234 = vsub.s32 %v231, %v233
    %v235 = vrot.slane %v214, %v234
    %vm236 = vcmask 130112
    %v237 = vsel %vm236, %v235, %v230
    %v238 = vlaneseq
    %v239 = vshrl.u32 %v238, 7
    %v240 = vsub.s32 %v226, %v239
    %v241 = vrot.slane %v217, %v240
    %v242 = vlaneseq
    %v243 = vshrl.u32 %v242, 7
    %v244 = vsub.s32 %v231, %v243
    %v245 = vrot.slane %v220, %v244
    %v246 = vsel %vm236, %v245, %v241
    %vm247 = vcmask 1041409
    %v248 = vsel %vm247, %v246, %v237
    %vm250 = vcmask 123904
    %v251 = vsel %vm250, %v248, -inf
    %252 = vmax.xlane.f32.xlu0 %v251
    %v253 = vpop.xlane.xlu0 %252
    %v255 = vlaneseq
    %v256 = vshrl.u32 %v255, 7
    %v257 = vsub.s32 0, %v256
    %v258 = vrot.slane %v253, %v257
    %v259 = vlaneseq
    %v260 = vshrl.u32 %v259, 7
    %v261 = vsub.s32 1, %v260
    %v262 = vrot.slane %v253, %v261
    %v265 = vsub.f32 %v211, %v258
    %v266 = vsub.f32 %v214, %v258
    %v267 = vsub.f32 %v217, %v262
    %v268 = vsub.f32 %v220, %v262
    %v269 = vmul.f32 %v265, 1.442695
    %v270 = vpow.pop %v269
    %v271 = vmul.f32 %v266, 1.442695
    %v272 = vpow.pop %v271
    %v273 = vmul.f32 %v267, 1.442695
    %v274 = vpow.pop %v273
    %v275 = vmul.f32 %v268, 1.442695
    %v276 = vpow.pop %v275
    %281 = vset.pattern.permute.xlu0 0
    %282 = vperm.xlu0 %281, %v270
    %v283 = vpop.permute.xlu0 %282
    %284 = vset.pattern.permute.xlu0 0
    %285 = vperm.xlu0 %284, %v272
    %v286 = vpop.permute.xlu0 %285
    %287 = vset.pattern.permute.xlu0 0
    %288 = vperm.xlu0 %287, %v274
    %v289 = vpop.permute.xlu0 %288
    %290 = vset.pattern.permute.xlu0 0
    %291 = vperm.xlu0 %290, %v276
    %v292 = vpop.permute.xlu0 %291
    %v293 = vlaneseq
    %v294 = vshrl.u32 %v293, 7
    %v295 = vsub.s32 %v226, %v294
    %v296 = vrot.slane %v283, %v295
    %v297 = vlaneseq
    %v298 = vshrl.u32 %v297, 7
    %v299 = vsub.s32 %v231, %v298
    %v300 = vrot.slane %v286, %v299
    %v301 = vsel %vm236, %v300, %v296
    %v302 = vlaneseq
    %v303 = vshrl.u32 %v302, 7
    %v304 = vsub.s32 %v226, %v303
    %v305 = vrot.slane %v289, %v304
    %v306 = vlaneseq
    %v307 = vshrl.u32 %v306, 7
    %v308 = vsub.s32 %v231, %v307
    %v309 = vrot.slane %v292, %v308
    %v310 = vsel %vm236, %v309, %v305
    %v311 = vsel %vm247, %v310, %v301
    %v313 = vsel %vm250, %v311, 0.0
    %314 = vadd.xlane.f32.xlu0 %v313
    %v315 = vpop.xlane.xlu0 %314
    %v317 = vlaneseq
    %v318 = vshrl.u32 %v317, 7
    %v319 = vsub.s32 0, %v318
    %v320 = vrot.slane %v315, %v319
    %v321 = vlaneseq
    %v322 = vshrl.u32 %v321, 7
    %v323 = vsub.s32 1, %v322
    %v324 = vrot.slane %v315, %v323
    %v327 = vrcp.pop %v320
    %v328 = vmul.f32 %v270, %v327
    %v329 = vmul.f32 %v272, %v327
    %v330 = vrcp.pop %v324
    %v331 = vmul.f32 %v274, %v330
    %v332 = vmul.f32 %v276, %v330
    %337 = vset.pattern.permute.xlu0 0
    %338 = vperm.xlu0 %337, %v328
    %v339 = vpop.permute.xlu0 %338
    %340 = vset.pattern.permute.xlu0 0
    %341 = vperm.xlu0 %340, %v329
    %v342 = vpop.permute.xlu0 %341
    %343 = vset.pattern.permute.xlu0 0
    %344 = vperm.xlu0 %343, %v331
    %v345 = vpop.permute.xlu0 %344
    %346 = vset.pattern.permute.xlu0 0
    %347 = vperm.xlu0 %346, %v332
    %v348 = vpop.permute.xlu0 %347
    %v349 = vlaneseq
    %v350 = vshrl.u32 %v349, 7
    %v351 = vsub.s32 %v226, %v350
    %v352 = vrot.slane %v339, %v351
    %v353 = vlaneseq
    %v354 = vshrl.u32 %v353, 7
    %v355 = vsub.s32 %v231, %v354
    %v356 = vrot.slane %v342, %v355
    %v357 = vsel %vm236, %v356, %v352
    %v358 = vlaneseq
    %v359 = vshrl.u32 %v358, 7
    %v360 = vsub.s32 %v226, %v359
    %v361 = vrot.slane %v345, %v360
    %v362 = vlaneseq
    %v363 = vshrl.u32 %v362, 7
    %v364 = vsub.s32 %v231, %v363
    %v365 = vrot.slane %v348, %v364
    %v366 = vsel %vm236, %v365, %v361
    %v367 = vsel %vm247, %v366, %v357
    %369 = vst.msk [vmem:[#allocation7] sm:$0x3] %vm250, %v367
    %v374 = vmul.f32 %v49, %v339
    %v375 = vmul.f32 %v50, %v342
    %v376 = vmul.f32 %v51, %v345
    %v377 = vmul.f32 %v52, %v348
    %v378 = vsel %vm57, %v374, 0.0
    %v379 = vsel %vm57, %v375, 0.0
    %v380 = vadd.f32 %v378, %v379
    %v381 = vrot.slane %v380, 4
    %v382 = vadd.f32 %v380, %v381
    %v383 = vrot.slane %v382, 2
    %v384 = vadd.f32 %v382, %v383
    %v385 = vrot.slane %v384, 1
    %v386 = vadd.f32 %v384, %v385
    %v387 = vsel %vm57, %v376, 0.0
    %v388 = vsel %vm57, %v377, 0.0
    %v389 = vadd.f32 %v387, %v388
    %v390 = vrot.slane %v389, 4
    %v391 = vadd.f32 %v389, %v390
    %v392 = vrot.slane %v391, 2
    %v393 = vadd.f32 %v391, %v392
    %v394 = vrot.slane %v393, 1
    %v395 = vadd.f32 %v393, %v394
    %v398 = vsel %vm247, %v395, %v386
    %vm400 = vcmask 254976
    %401 = vst.msk [vmem:[#allocation8] sm:$0x3] %vm400, %v398
    // Predicated region
    $region26: #{tpu_custom_call.1} parent=1 // pred_check
      _
    $region27: #{tpu_custom_call.1} parent=1 // pred_check_branch
      %403 = sbr.rel (0) target = $region29
    $region28: #{tpu_custom_call.1} parent=1 // pred_region
      %s405 = ssub.s32 32, 32
      %406 = vsyncadd [#allocation4], %s405
      %s408 = sshll.u32 [#allocation7], 4
      %s409 = int_to_ptr.vmem [resolvable:$true] %s408
      %411 = dma.vmem_to_hbm [thread:$0]  %s409, 32, %s4, [#allocation4]
    $region29: #{tpu_custom_call.1} parent=1 // pred_fallthru
      _
    // Predicated region
    $region30: #{tpu_custom_call.1} parent=1 // pred_check
      _
    $region31: #{tpu_custom_call.1} parent=1 // pred_check_branch
      %413 = sbr.rel (0) target = $region33
    $region32: #{tpu_custom_call.1} parent=1 // pred_region
      %s415 = ssub.s32 32, 32
      %416 = vsyncadd [#allocation9], %s415
      %s418 = sshll.u32 [#allocation8], 4
      %s419 = int_to_ptr.vmem [resolvable:$true] %s418
      %421 = dma.vmem_to_hbm [thread:$0]  %s419, 32, %s5, [#allocation9]
    $region33: #{tpu_custom_call.1} parent=1 // pred_fallthru
      _
    // Predicated region
    $region34: #{tpu_custom_call.1} parent=1 // pred_check
      _
    $region35: #{tpu_custom_call.1} parent=1 // pred_check_branch
      %423 = sbr.rel (0) target = $region37
    $region36: #{tpu_custom_call.1} parent=1 // pred_region
      %424 = dma.done [#allocation4], 32
    $region37: #{tpu_custom_call.1} parent=1 // pred_fallthru
      _
    // Predicated region
    $region38: #{tpu_custom_call.1} parent=1 // pred_check
      _
    $region39: #{tpu_custom_call.1} parent=1 // pred_check_branch
      %426 = sbr.rel (0) target = $region41
    $region40: #{tpu_custom_call.1} parent=1 // pred_region
      %427 = dma.done [#allocation9], 32
    $region41: #{tpu_custom_call.1} parent=1 // pred_fallthru
      _
    %428 = vsyncpa [#allocation3], 1
    %429 = vsyncpa [#allocation6], 1
    %430 = vsyncpa [#allocation4], 1
    %431 = vsyncpa [#allocation9], 1

</llo_original>
